<compile_context>
chip_gen: v6e
topology: v6e:2x2x1
jax: 0.10.0
libtpu: 0.0.40
codegen_flags: <defaults>
</compile_context>

<pallas_src>
import functools

import jax
import jax.numpy as jnp
from jax.experimental import pallas as pl
from jax.experimental.pallas import tpu as pltpu


_MAX_BLOCK_BYTES = 4 * 1024 * 1024   # per-block cap (v7x-safe: 4 bufs ~= 16 MiB)
_MIN_BLOCK_BYTES = 512 * 1024        # don't shrink blocks below this when splitting
_MAX_COLS = 2048                     # lane-dense slab width cap (multiple of 128)
_MIN_GRID_STEPS = 8                  # keep both v7x TensorCores busy on big inputs
_VMEM_LIMIT_BYTES = 32 * 1024 * 1024


def _sublane_pack(dtype):
    itemsize = jnp.dtype(dtype).itemsize
    return max(32 // max(itemsize, 1), 8)   # 8 for 4B, 16 for 2B, 32 for 1B dtypes


def _choose_cols(n):
    """Largest multiple of 128 (<= _MAX_COLS) dividing n, or None if n % 128 != 0."""
    if n % 128 != 0:
        return None
    for c in range(_MAX_COLS, 0, -128):
        if n % c == 0:
            return c
    return 128


def _choose_block_rows(rows, cols, itemsize, pack):
    br = min(max(_MAX_BLOCK_BYTES // (cols * itemsize), 1), rows)
    # If the grid collapsed to a couple of steps on a large input, back the block
    # off so both v7x TensorCores get work, but keep blocks >= 512 KiB.
    if pl.cdiv(rows, br) < _MIN_GRID_STEPS:
        min_rows = max(_MIN_BLOCK_BYTES // (cols * itemsize), 1)
        br = min(br, max(pl.cdiv(rows, _MIN_GRID_STEPS), min_rows))
    if br >= rows:
        return rows                       # single full-extent block (always legal)
    br = (br // pack) * pack              # sublane-packing alignment for partial grids
    return br if br >= pack else rows


def _lambda_kernel(x_ref, o_ref, *, f, compute_dtype):
    x = x_ref[...]
    if compute_dtype is not None and x.dtype != compute_dtype:
        x = x.astype(compute_dtype)
    o_ref[...] = f(x).astype(o_ref.dtype)


def make_lambda_kernel(f, *, compute_dtype=None):
    """Return a callable equivalent to Lambda(f).forward for JAX-traceable elementwise f."""

    def apply(x):
        orig_shape = x.shape
        dtype = x.dtype
        itemsize = jnp.dtype(dtype).itemsize
        n = x.size
        if n == 0:
            return x

        cdtype = compute_dtype
        if cdtype is None and jnp.issubdtype(dtype, jnp.floating) and itemsize < 4:
            cdtype = jnp.float32   # v5e has no bf16 VPU/EUP; cost hidden (mem-bound)

        pack = _sublane_pack(dtype)
        cols = _choose_cols(n)
        pad = 0
        if cols is None:
            # Fallback only when element count is not a multiple of 128 lanes.
            cols = 128
            padded_n = pl.cdiv(n, cols) * cols
            pad = padded_n - n
            flat = jnp.concatenate([x.reshape(-1), jnp.zeros((pad,), dtype=dtype)])
        else:
            flat = x.reshape(-1)

        rows = flat.size // cols
        slab = flat.reshape(rows, cols)
        br = _choose_block_rows(rows, cols, itemsize, pack)
        grid = (pl.cdiv(rows, br),)

        kernel = functools.partial(_lambda_kernel, f=f, compute_dtype=cdtype)

        out = pl.pallas_call(
            kernel,
            out_shape=jax.ShapeDtypeStruct(slab.shape, dtype),
            grid=grid,
            in_specs=[pl.BlockSpec((br, cols), lambda i: (i, 0))],
            out_specs=pl.BlockSpec((br, cols), lambda i: (i, 0)),
            compiler_params=pltpu.CompilerParams(
                dimension_semantics=("parallel",),
                vmem_limit_bytes=_VMEM_LIMIT_BYTES,
            ),
            cost_estimate=pl.CostEstimate(
                flops=2 * n,
                transcendentals=n,
                bytes_accessed=2 * n * itemsize,
            ),
        )(slab)

        if pad:
            return out.reshape(-1)[:n].reshape(orig_shape)
        return out.reshape(orig_shape)

    # jit the wrapper so the reshapes/pad bookkeeping fuse around the kernel.
    return jax.jit(apply)


if __name__ == "__main__":
    key = jax.random.PRNGKey(0)

    # The wrapped lambda (any JAX-traceable elementwise function works).
    f = lambda t: t * jax.nn.sigmoid(t)
    lambda_mod = make_lambda_kernel(f)

    # Primary check: NCHW conv-style f32 tensor (no-pad, lane-dense path).
    x = jax.random.normal(key, (2, 4, 16, 16), dtype=jnp.float32)
    y = lambda_mod(x)
    jax.block_until_ready(y)
    ref = f(x)
    assert y.shape == x.shape and y.dtype == x.dtype
    assert jnp.allclose(y, ref, atol=1e-6, rtol=1e-6)

    # bf16 input: kernel upcasts to f32 internally, stores back as bf16.
    xb = x.astype(jnp.bfloat16)
    yb = lambda_mod(xb)
    jax.block_until_ready(yb)
    refb = f(xb.astype(jnp.float32)).astype(jnp.bfloat16)
    assert yb.dtype == jnp.bfloat16
    assert jnp.allclose(yb.astype(jnp.float32), refb.astype(jnp.float32),
                        atol=2e-2, rtol=2e-2)

    # Awkward size (not a multiple of 128): exercises the pad fallback path.
    xo = jax.random.normal(jax.random.PRNGKey(1), (3, 5, 7, 11), dtype=jnp.float32)
    yo = lambda_mod(xo)
    jax.block_until_ready(yo)
    assert jnp.allclose(yo, f(xo), atol=1e-6, rtol=1e-6)

    # TODO(synk): arbitrary (non-JAX-traceable / non-elementwise) Python callables f
    # passed to Lambda have no generic Pallas equivalent; only JAX-traceable
    # elementwise f is supported here.
    print("KERNEL_OK")
</pallas_src>

<mosaic_0001>
module attributes {stable_mosaic.version = 11 : i64} {
  func.func @_lambda_kernel(%arg0: i32, %arg1: memref<1x2048xf32, #tpu.memory_space<vmem>>, %arg2: memref<1x2048xf32, #tpu.memory_space<vmem>>) attributes {dimension_semantics = [#tpu.dimension_semantics<parallel>], iteration_bounds = array<i64: 1>, scalar_prefetch = 0 : i64, scratch_operands = 0 : i64, tpu.core_type = #tpu.core_type<tc>, window_params = [{transform_indices = @transform_0, window_bounds = array<i64: 1, 2048>}, {transform_indices = @transform_1, window_bounds = array<i64: 1, 2048>}]} {
    %c0 = arith.constant 0 : index
    %c0_0 = arith.constant 0 : index
    %0 = vector.load %arg1[%c0, %c0_0] : memref<1x2048xf32, #tpu.memory_space<vmem>>, vector<1x2048xf32>
    %1 = arith.negf %0 : vector<1x2048xf32>
    %2 = math.exp %1 : vector<1x2048xf32>
    %cst = arith.constant 1.000000e+00 : f32
    %3 = vector.broadcast %cst : f32 to vector<1x2048xf32>
    %4 = arith.addf %3, %2 : vector<1x2048xf32>
    %5 = arith.divf %3, %4 : vector<1x2048xf32>
    %6 = arith.mulf %0, %5 : vector<1x2048xf32>
    %c0_1 = arith.constant 0 : index
    %c0_2 = arith.constant 0 : index
    %7 = vector.load %arg2[%c0_1, %c0_2] : memref<1x2048xf32, #tpu.memory_space<vmem>>, vector<1x2048xf32>
    tpu.vector_store %arg2[%c0_1, %c0_2], %6 {strides = array<i32>} : memref<1x2048xf32, #tpu.memory_space<vmem>>, vector<1x2048xf32>,
    return
  }
  func.func @transform_0(%arg0: i32) -> (i32, i32) {
    %c0_i32 = arith.constant 0 : i32
    %c0_i32_0 = arith.constant 0 : i32
    return %arg0, %c0_i32 : i32, i32
  }
  func.func @transform_1(%arg0: i32) -> (i32, i32) {
    %c0_i32 = arith.constant 0 : i32
    %c0_i32_0 = arith.constant 0 : i32
    return %arg0, %c0_i32 : i32, i32
  }
}

</mosaic_0001>

<llo_original>
// kernel: apply.1
$region0: #{apply.1}
  #allocation0 [shape = 'u32[]', space=smem, size = 0x4, offset = 0x4, fixed_abs, tag = 'smem constant byte address 0x4 - core index']
  #allocation1 [shape = 'u32[144,128]{1,0:T(1,128)}', space=vmem, size = 0x12000, scoped, tag = 'internal scratch']
  %s0 = inlined_call_operand.vmem [shape: f32[1,2048], index: 0, kind: input, shape index: {}]
  %s1 = inlined_call_operand.vmem [shape: f32[1,2048], index: 1, kind: output, shape index: {}]
  %s2 = sld [smem:[#allocation0]]
  $region14: #{apply.1} parent=0
    _
  %s4 = ssub.s32 1, %s2
  %s5 = scalar_select 0, %s4, %s2
  // Predicated region
  $region2: #{apply.1} parent=0 // pred_check
    _
  $region3: #{apply.1} parent=0 // pred_check_branch
    %7 = sbr.rel (0) target = $region5
  $region4: #{apply.1} parent=0 // pred_region
    _
  $region5: #{apply.1} parent=0 // pred_fallthru
    _
  %v8 = vld [vmem:[%s0] sm:$0xff]
  %v9 = vld [vmem:[%s0 + $0x8] sm:$0xff]
  %v10 = vxor.u32 %v8, 2147483648
  %v11 = vxor.u32 %v9, 2147483648
  %v12 = vmul.f32 %v10, 1.442695
  %v13 = vpow.pop %v12
  %v14 = vmul.f32 %v11, 1.442695
  %v15 = vpow.pop %v14
  %v16 = vadd.f32 %v13, 1.0
  %v17 = vadd.f32 %v15, 1.0
  %v18 = vrcp.pop %v16
  %v19 = vmul.f32 1.0, %v18
  %v20 = vrcp.pop %v17
  %v21 = vmul.f32 1.0, %v20
  %v22 = vmul.f32 %v8, %v19
  %v23 = vmul.f32 %v9, %v21
  %24 = vst [vmem:[%s1] sm:$0xff] %v22
  %25 = vst [vmem:[%s1 + $0x8] sm:$0xff] %v23
  // Predicated region
  $region6: #{apply.1} parent=0 // pred_check
    _
  $region7: #{apply.1} parent=0 // pred_check_branch
    %27 = sbr.rel (0) target = $region9
  $region8: #{apply.1} parent=0 // pred_region
    _
  $region9: #{apply.1} parent=0 // pred_fallthru
    _
  // Predicated region
  $region10: #{apply.1} parent=0 // pred_check
    _
  $region11: #{apply.1} parent=0 // pred_check_branch
    %29 = sbr.rel (0) target = $region13
  $region12: #{apply.1} parent=0 // pred_region
    _
  $region13: #{apply.1} parent=0 // pred_fallthru
    _

</llo_original>
